<compile_context>
chip_gen: v7x
topology: tpu7x:2x2x1
jax: 0.10.0
libtpu: 0.0.40
codegen_flags: <defaults>
</compile_context>

<pallas_src>
import functools
import math

import jax
import jax.numpy as jnp
from jax.experimental import pallas as pl
from jax.experimental.pallas import tpu as pltpu

_TEN_OVER_LN10 = 10.0 / math.log(10.0)


def _round_up(x, m):
    return ((x + m - 1) // m) * m


def _tile_bytes(sub, lane, itemsize):
    """VMEM bytes of one (sub, lane) slab after (8,128) tile padding."""
    sub_mult = 8 * (4 // itemsize)          # 8 rows for f32, 16 for bf16
    return _round_up(sub, sub_mult) * _round_up(lane, 128) * itemsize


def _vmem_capacity_bytes():
    # Per-TensorCore VMEM: 128 MiB on v5e/v6e, 64 MiB on v7x.
    try:
        return int(pltpu.get_tpu_info().vmem_capacity_bytes)
    except Exception:
        return 64 * 1024 * 1024             # assume the smallest (v7x)


def _recons_kernel(a_inv_ref, coded_ref, xs_ref, snr_ref, *, N, L):
    """Per-batch-tile hot path.

    a_inv_ref : (B, N, N)    f32        inv(XS_Int_pred[b] * S_N)
    coded_ref : (B, N, cols) f32/bf16   coded spectrum measurement
    xs_ref    : (B, K, N*L)  f32/bf16   X_S with its trailing dims flattened
    snr_ref   : (N, B)       f32        per-(row, batch) SNR, lane-dense store
    """
    f32 = jnp.float32
    a_inv = a_inv_ref[...]
    coded = coded_ref[...].astype(f32)

    # f_gt = sum(X_S, dim=1), fused so X_S is streamed from HBM exactly once.
    # Lane-dense: last dim is N*L (= 128 for N=8, L=16).
    f_gt = jnp.sum(xs_ref[...].astype(f32), axis=1)                  # (B, N*L)

    # re_1[b] = A_inv[b] @ coded[b].  N is tiny, so instead of B unrolled
    # (and <1%-utilized) MXU matmuls we contract over j with lane/sublane
    # broadcasts: N VPU FMAs over the whole (B, N, cols) tile.
    re_1 = a_inv[:, :, 0:1] * coded[:, 0:1, :]
    for j in range(1, N):
        re_1 = re_1 + a_inv[:, :, j:j + 1] * coded[:, j:j + 1, :]    # (B,N,cols)

    # De-shift + MSE + SNR accumulated per row: row i keeps re_1 columns
    # [i, i+L) (tensorshift_r by -i then first spec_length columns) and is
    # compared against f_gt lanes [i*L, (i+1)*L).  No (B, N, L) `f`
    # materialization / N-way concatenate.
    uppers = []
    lowers = []
    for i in range(N):
        f_i = re_1[:, i, i:i + L]                                    # (B, L)
        d_i = f_gt[:, i * L:(i + 1) * L] - f_i                       # (B, L)
        uppers.append(jnp.sum(f_i * f_i, axis=-1))                   # (B,)
        lowers.append(jnp.sum(d_i * d_i, axis=-1))                   # (B,)
    upper = jnp.stack(uppers, axis=0)                                # (N, B)
    lower = jnp.stack(lowers, axis=0)                                # (N, B)

    # 10*log10(u/l) == (10/ln10) * (ln u - ln l); two EUP logs pipeline better
    # than a serialized divide feeding one log.  lower == 0 yields +/-inf
    # exactly like the PyTorch reference (intentional).
    snr_ref[...] = _TEN_OVER_LN10 * (jnp.log(upper) - jnp.log(lower))


def recons_loss(coded_spectrum_measure_S, XS_Int_pred, X_S, S_N,
                *, batch_tile=None):
    """Forward pass of ReconsLoss.  Returns (100 - snr.mean(), snr.mean()).

    batch_tile: optional batch-tile size B (batch elements per grid step).
    In the multi-tile path it is rounded up to a multiple of 128 so the
    lane-dense (N, B) output block is legal.
    """
    num, N, cols = coded_spectrum_measure_S.shape
    L = cols - N                                   # spec_length
    K = X_S.shape[1]

    f32 = jnp.float32

    # Keep f32 / bf16 inputs as-is (cast per tile inside the kernel instead of
    # an extra full-array HBM pass); anything else is cast once here.
    def _kernel_dtype(x):
        return x if x.dtype in (jnp.float32, jnp.bfloat16) else x.astype(f32)

    coded = _kernel_dtype(coded_spectrum_measure_S)
    # Free, contiguous row-major reshape: makes the dominant stream lane-dense.
    xs = _kernel_dtype(X_S).reshape(num, K, N * L)

    # TODO(synk): the batched tiny (N x N) pivoted-LU inverse stays in XLA;
    # fusing an unrolled Gauss-Jordan solve into the kernel would remove this
    # separate op and the a_inv HBM round-trip, but a robust vectorized
    # pivoted solve inside Pallas is out of scope here.
    a_inv = jnp.linalg.inv(
        XS_Int_pred.astype(f32) * S_N.astype(f32)[None, :, :])

    # ---- per-generation VMEM budget & batch tile B --------------------------
    phys = _vmem_capacity_bytes()
    # v5e/v6e (128 MiB): 96 MiB scoped limit; v7x (64 MiB): 48 MiB.
    vmem_limit = min(phys * 3 // 4, 96 * 1024 * 1024)
    budget = int(vmem_limit * 0.85)

    # Tile-PADDED VMEM bytes per batch element for the input blocks ...
    per_elem_in = (_tile_bytes(N, N, 4)
                   + _tile_bytes(N, cols, coded.dtype.itemsize)
                   + _tile_bytes(K, N * L, xs.dtype.itemsize))
    # ... x2 for double-buffering, plus ~2x more for in-kernel intermediates
    # (re_1, f32 casts, f_gt) that live in VMEM scratch at these block sizes.
    per_elem_step = 4 * per_elem_in

    MAX_B = 2048
    if batch_tile is not None:
        B = int(batch_tile)
        if B < num:
            # Multi-tile path: the lane-dense (N, B) output block requires B
            # to be a multiple of 128.
            B = max(128, _round_up(B, 128))
    elif num * per_elem_step <= budget:
        B = num                      # single grid step, no batch padding needed
    else:
        B = 128
        while B < MAX_B and 2 * B * per_elem_step <= budget:
            B *= 2

    num_pad = _round_up(num, B)
    if num_pad != num:               # pad the batch; padded cols are sliced off
        pad = num_pad - num
        a_inv = jnp.pad(a_inv, ((0, pad), (0, 0), (0, 0)))
        coded = jnp.pad(coded, ((0, pad), (0, 0), (0, 0)))
        xs = jnp.pad(xs, ((0, pad), (0, 0), (0, 0)))

    kernel = functools.partial(_recons_kernel, N=N, L=L)

    snr_t = pl.pallas_call(
        kernel,
        out_shape=jax.ShapeDtypeStruct((N, num_pad), f32),
        grid=(num_pad // B,),
        in_specs=[
            pl.BlockSpec((B, N, N), lambda t: (t, 0, 0)),
            pl.BlockSpec((B, N, cols), lambda t: (t, 0, 0)),
            pl.BlockSpec((B, K, N * L), lambda t: (t, 0, 0)),
        ],
        out_specs=pl.BlockSpec((N, B), lambda t: (0, t)),
        compiler_params=pltpu.CompilerParams(
            # Embarrassingly parallel over batch tiles.
            # TODO(synk): on v7x, if the trace shows a single TensorCore in
            # use, switch this axis to pltpu.CORE_PARALLEL.
            dimension_semantics=("parallel",),
            vmem_limit_bytes=vmem_limit,
        ),
    )(a_inv, coded, xs)

    snr = snr_t[:, :num]             # drop batch padding (padded cols are NaN)
    snr_mean = jnp.mean(snr)
    return 100.0 - snr_mean, snr_mean


def _recons_loss_ref(coded, xs_int_pred, x_s, s_n):
    """Pure-JAX reference mirroring the PyTorch forward (float32)."""
    num, N, cols = coded.shape
    L = cols - N
    a_inv = jnp.linalg.inv(xs_int_pred * s_n[None])
    re_1 = jnp.einsum("nij,njc->nic", a_inv, coded,
                      precision=jax.lax.Precision.HIGHEST)
    f = jnp.stack([re_1[:, i, i:i + L] for i in range(N)], axis=1)  # [num,N,L]
    f_gt = jnp.sum(x_s, axis=1)
    mse = (f_gt - f) ** 2
    snr = 10.0 * jnp.log10(jnp.sum(f * f, axis=2) / jnp.sum(mse, axis=2))
    return 100.0 - snr.mean(), snr.mean()


if __name__ == "__main__":
    key = jax.random.PRNGKey(0)
    k1, k2, k3, k4, k5, k6, k7, _ = jax.random.split(key, 8)

    N, L, K = 8, 16, 3
    cols = N + L

    # Deterministic "parameter" S_N (shape [N, N]), made well-conditioned.
    S_N = (4.0 * jnp.eye(N, dtype=jnp.float32)
           + jax.random.uniform(k1, (N, N), jnp.float32, 0.1, 1.0))

    # --- config 1: small batch, single grid step (B = num) ------------------
    num = 2
    XS_Int_pred = jax.random.uniform(k2, (num, N, N), jnp.float32, 0.5, 1.5)
    coded = jax.random.normal(k3, (num, N, cols), jnp.float32)
    X_S = jax.random.normal(k4, (num, K, N, L), jnp.float32)

    loss, snr_mean = recons_loss(coded, XS_Int_pred, X_S, S_N)
    loss = jax.block_until_ready(loss)
    snr_mean = jax.block_until_ready(snr_mean)
    ref_loss, ref_snr = _recons_loss_ref(coded, XS_Int_pred, X_S, S_N)
    assert jnp.allclose(loss, ref_loss, rtol=1e-4, atol=1e-3), (loss, ref_loss)
    assert jnp.allclose(snr_mean, ref_snr, rtol=1e-4, atol=1e-3), (snr_mean, ref_snr)

    # --- config 2: larger batch, multi-tile grid + batch padding ------------
    num2 = 160
    XS_Int_pred2 = jax.random.uniform(k5, (num2, N, N), jnp.float32, 0.5, 1.5)
    coded2 = jax.random.normal(k6, (num2, N, cols), jnp.float32)
    X_S2 = jax.random.normal(k7, (num2, K, N, L), jnp.float32)

    loss2, snr2 = recons_loss(coded2, XS_Int_pred2, X_S2, S_N, batch_tile=128)
    loss2 = jax.block_until_ready(loss2)
    snr2 = jax.block_until_ready(snr2)
    ref_loss2, ref_snr2 = _recons_loss_ref(coded2, XS_Int_pred2, X_S2, S_N)
    assert jnp.allclose(loss2, ref_loss2, rtol=1e-4, atol=1e-3), (loss2, ref_loss2)
    assert jnp.allclose(snr2, ref_snr2, rtol=1e-4, atol=1e-3), (snr2, ref_snr2)

    # --- config 3: same data, auto batch-tile path (B = num, single step) ---
    loss3, snr3 = recons_loss(coded2, XS_Int_pred2, X_S2, S_N)
    loss3 = jax.block_until_ready(loss3)
    snr3 = jax.block_until_ready(snr3)
    assert jnp.allclose(loss3, ref_loss2, rtol=1e-4, atol=1e-3), (loss3, ref_loss2)
    assert jnp.allclose(snr3, ref_snr2, rtol=1e-4, atol=1e-3), (snr3, ref_snr2)

    print("KERNEL_OK")
</pallas_src>

<mosaic_0001>
module attributes {stable_mosaic.version = 11 : i64} {
  func.func @_recons_kernel(%arg0: i32, %arg1: memref<2x8x8xf32, #tpu.memory_space<vmem>>, %arg2: memref<2x8x24xf32, #tpu.memory_space<vmem>>, %arg3: memref<2x3x128xf32, #tpu.memory_space<vmem>>, %arg4: memref<8x2xf32, #tpu.memory_space<vmem>>) attributes {dimension_semantics = [#tpu.dimension_semantics<parallel>], iteration_bounds = array<i64: 1>, scalar_prefetch = 0 : i64, scratch_operands = 0 : i64, tpu.core_type = #tpu.core_type<tc>, window_params = [{transform_indices = @transform_0, window_bounds = array<i64: 2, 8, 8>}, {transform_indices = @transform_1, window_bounds = array<i64: 2, 8, 24>}, {transform_indices = @transform_2, window_bounds = array<i64: 2, 3, 128>}, {transform_indices = @transform_3, window_bounds = array<i64: 8, 2>}]} {
    %c0 = arith.constant 0 : index
    %c0_0 = arith.constant 0 : index
    %c0_1 = arith.constant 0 : index
    %0 = vector.load %arg1[%c0, %c0_0, %c0_1] : memref<2x8x8xf32, #tpu.memory_space<vmem>>, vector<2x8x8xf32>
    %c0_2 = arith.constant 0 : index
    %c0_3 = arith.constant 0 : index
    %c0_4 = arith.constant 0 : index
    %1 = vector.load %arg2[%c0_2, %c0_3, %c0_4] : memref<2x8x24xf32, #tpu.memory_space<vmem>>, vector<2x8x24xf32>
    %c0_5 = arith.constant 0 : index
    %c0_6 = arith.constant 0 : index
    %c0_7 = arith.constant 0 : index
    %2 = vector.load %arg3[%c0_5, %c0_6, %c0_7] : memref<2x3x128xf32, #tpu.memory_space<vmem>>, vector<2x3x128xf32>
    %cst = arith.constant dense<0.000000e+00> : vector<2x128xf32>
    %3 = vector.multi_reduction <add>, %2, %cst [1] : vector<2x3x128xf32> to vector<2x128xf32>
    %4 = vector.extract_strided_slice %0 {offsets = [0, 0, 0], sizes = [2, 8, 1], strides = [1, 1, 1]} : vector<2x8x8xf32> to vector<2x8x1xf32>
    %5 = vector.extract_strided_slice %1 {offsets = [0, 0, 0], sizes = [2, 1, 24], strides = [1, 1, 1]} : vector<2x8x24xf32> to vector<2x1x24xf32>
    %6 = vector.broadcast %4 : vector<2x8x1xf32> to vector<2x8x24xf32>
    %7 = vector.broadcast %5 : vector<2x1x24xf32> to vector<2x8x24xf32>
    %8 = arith.mulf %6, %7 : vector<2x8x24xf32>
    %9 = vector.extract_strided_slice %0 {offsets = [0, 0, 1], sizes = [2, 8, 1], strides = [1, 1, 1]} : vector<2x8x8xf32> to vector<2x8x1xf32>
    %10 = vector.extract_strided_slice %1 {offsets = [0, 1, 0], sizes = [2, 1, 24], strides = [1, 1, 1]} : vector<2x8x24xf32> to vector<2x1x24xf32>
    %11 = vector.broadcast %9 : vector<2x8x1xf32> to vector<2x8x24xf32>
    %12 = vector.broadcast %10 : vector<2x1x24xf32> to vector<2x8x24xf32>
    %13 = arith.mulf %11, %12 : vector<2x8x24xf32>
    %14 = arith.addf %8, %13 : vector<2x8x24xf32>
    %15 = vector.extract_strided_slice %0 {offsets = [0, 0, 2], sizes = [2, 8, 1], strides = [1, 1, 1]} : vector<2x8x8xf32> to vector<2x8x1xf32>
    %16 = vector.extract_strided_slice %1 {offsets = [0, 2, 0], sizes = [2, 1, 24], strides = [1, 1, 1]} : vector<2x8x24xf32> to vector<2x1x24xf32>
    %17 = vector.broadcast %15 : vector<2x8x1xf32> to vector<2x8x24xf32>
    %18 = vector.broadcast %16 : vector<2x1x24xf32> to vector<2x8x24xf32>
    %19 = arith.mulf %17, %18 : vector<2x8x24xf32>
    %20 = arith.addf %14, %19 : vector<2x8x24xf32>
    %21 = vector.extract_strided_slice %0 {offsets = [0, 0, 3], sizes = [2, 8, 1], strides = [1, 1, 1]} : vector<2x8x8xf32> to vector<2x8x1xf32>
    %22 = vector.extract_strided_slice %1 {offsets = [0, 3, 0], sizes = [2, 1, 24], strides = [1, 1, 1]} : vector<2x8x24xf32> to vector<2x1x24xf32>
    %23 = vector.broadcast %21 : vector<2x8x1xf32> to vector<2x8x24xf32>
    %24 = vector.broadcast %22 : vector<2x1x24xf32> to vector<2x8x24xf32>
    %25 = arith.mulf %23, %24 : vector<2x8x24xf32>
    %26 = arith.addf %20, %25 : vector<2x8x24xf32>
    %27 = vector.extract_strided_slice %0 {offsets = [0, 0, 4], sizes = [2, 8, 1], strides = [1, 1, 1]} : vector<2x8x8xf32> to vector<2x8x1xf32>
    %28 = vector.extract_strided_slice %1 {offsets = [0, 4, 0], sizes = [2, 1, 24], strides = [1, 1, 1]} : vector<2x8x24xf32> to vector<2x1x24xf32>
    %29 = vector.broadcast %27 : vector<2x8x1xf32> to vector<2x8x24xf32>
    %30 = vector.broadcast %28 : vector<2x1x24xf32> to vector<2x8x24xf32>
    %31 = arith.mulf %29, %30 : vector<2x8x24xf32>
    %32 = arith.addf %26, %31 : vector<2x8x24xf32>
    %33 = vector.extract_strided_slice %0 {offsets = [0, 0, 5], sizes = [2, 8, 1], strides = [1, 1, 1]} : vector<2x8x8xf32> to vector<2x8x1xf32>
    %34 = vector.extract_strided_slice %1 {offsets = [0, 5, 0], sizes = [2, 1, 24], strides = [1, 1, 1]} : vector<2x8x24xf32> to vector<2x1x24xf32>
    %35 = vector.broadcast %33 : vector<2x8x1xf32> to vector<2x8x24xf32>
    %36 = vector.broadcast %34 : vector<2x1x24xf32> to vector<2x8x24xf32>
    %37 = arith.mulf %35, %36 : vector<2x8x24xf32>
    %38 = arith.addf %32, %37 : vector<2x8x24xf32>
    %39 = vector.extract_strided_slice %0 {offsets = [0, 0, 6], sizes = [2, 8, 1], strides = [1, 1, 1]} : vector<2x8x8xf32> to vector<2x8x1xf32>
    %40 = vector.extract_strided_slice %1 {offsets = [0, 6, 0], sizes = [2, 1, 24], strides = [1, 1, 1]} : vector<2x8x24xf32> to vector<2x1x24xf32>
    %41 = vector.broadcast %39 : vector<2x8x1xf32> to vector<2x8x24xf32>
    %42 = vector.broadcast %40 : vector<2x1x24xf32> to vector<2x8x24xf32>
    %43 = arith.mulf %41, %42 : vector<2x8x24xf32>
    %44 = arith.addf %38, %43 : vector<2x8x24xf32>
    %45 = vector.extract_strided_slice %0 {offsets = [0, 0, 7], sizes = [2, 8, 1], strides = [1, 1, 1]} : vector<2x8x8xf32> to vector<2x8x1xf32>
    %46 = vector.extract_strided_slice %1 {offsets = [0, 7, 0], sizes = [2, 1, 24], strides = [1, 1, 1]} : vector<2x8x24xf32> to vector<2x1x24xf32>
    %47 = vector.broadcast %45 : vector<2x8x1xf32> to vector<2x8x24xf32>
    %48 = vector.broadcast %46 : vector<2x1x24xf32> to vector<2x8x24xf32>
    %49 = arith.mulf %47, %48 : vector<2x8x24xf32>
    %50 = arith.addf %44, %49 : vector<2x8x24xf32>
    %51 = vector.extract_strided_slice %50 {offsets = [0, 0, 0], sizes = [2, 1, 16], strides = [1, 1, 1]} : vector<2x8x24xf32> to vector<2x1x16xf32>
    %52 = vector.shape_cast %51 : vector<2x1x16xf32> to vector<2x16xf32>
    %53 = vector.extract_strided_slice %3 {offsets = [0, 0], sizes = [2, 16], strides = [1, 1]} : vector<2x128xf32> to vector<2x16xf32>
    %54 = arith.subf %53, %52 : vector<2x16xf32>
    %55 = arith.mulf %52, %52 : vector<2x16xf32>
    %cst_8 = arith.constant dense<0.000000e+00> : vector<2xf32>
    %56 = vector.multi_reduction <add>, %55, %cst_8 [1] : vector<2x16xf32> to vector<2xf32>
    %57 = arith.mulf %54, %54 : vector<2x16xf32>
    %cst_9 = arith.constant dense<0.000000e+00> : vector<2xf32>
    %58 = vector.multi_reduction <add>, %57, %cst_9 [1] : vector<2x16xf32> to vector<2xf32>
    %59 = vector.extract_strided_slice %50 {offsets = [0, 1, 1], sizes = [2, 1, 16], strides = [1, 1, 1]} : vector<2x8x24xf32> to vector<2x1x16xf32>
    %60 = vector.shape_cast %59 : vector<2x1x16xf32> to vector<2x16xf32>
    %61 = vector.extract_strided_slice %3 {offsets = [0, 16], sizes = [2, 16], strides = [1, 1]} : vector<2x128xf32> to vector<2x16xf32>
    %62 = arith.subf %61, %60 : vector<2x16xf32>
    %63 = arith.mulf %60, %60 : vector<2x16xf32>
    %cst_10 = arith.constant dense<0.000000e+00> : vector<2xf32>
    %64 = vector.multi_reduction <add>, %63, %cst_10 [1] : vector<2x16xf32> to vector<2xf32>
    %65 = arith.mulf %62, %62 : vector<2x16xf32>
    %cst_11 = arith.constant dense<0.000000e+00> : vector<2xf32>
    %66 = vector.multi_reduction <add>, %65, %cst_11 [1] : vector<2x16xf32> to vector<2xf32>
    %67 = vector.extract_strided_slice %50 {offsets = [0, 2, 2], sizes = [2, 1, 16], strides = [1, 1, 1]} : vector<2x8x24xf32> to vector<2x1x16xf32>
    %68 = vector.shape_cast %67 : vector<2x1x16xf32> to vector<2x16xf32>
    %69 = vector.extract_strided_slice %3 {offsets = [0, 32], sizes = [2, 16], strides = [1, 1]} : vector<2x128xf32> to vector<2x16xf32>
    %70 = arith.subf %69, %68 : vector<2x16xf32>
    %71 = arith.mulf %68, %68 : vector<2x16xf32>
    %cst_12 = arith.constant dense<0.000000e+00> : vector<2xf32>
    %72 = vector.multi_reduction <add>, %71, %cst_12 [1] : vector<2x16xf32> to vector<2xf32>
    %73 = arith.mulf %70, %70 : vector<2x16xf32>
    %cst_13 = arith.constant dense<0.000000e+00> : vector<2xf32>
    %74 = vector.multi_reduction <add>, %73, %cst_13 [1] : vector<2x16xf32> to vector<2xf32>
    %75 = vector.extract_strided_slice %50 {offsets = [0, 3, 3], sizes = [2, 1, 16], strides = [1, 1, 1]} : vector<2x8x24xf32> to vector<2x1x16xf32>
    %76 = vector.shape_cast %75 : vector<2x1x16xf32> to vector<2x16xf32>
    %77 = vector.extract_strided_slice %3 {offsets = [0, 48], sizes = [2, 16], strides = [1, 1]} : vector<2x128xf32> to vector<2x16xf32>
    %78 = arith.subf %77, %76 : vector<2x16xf32>
    %79 = arith.mulf %76, %76 : vector<2x16xf32>
    %cst_14 = arith.constant dense<0.000000e+00> : vector<2xf32>
    %80 = vector.multi_reduction <add>, %79, %cst_14 [1] : vector<2x16xf32> to vector<2xf32>
    %81 = arith.mulf %78, %78 : vector<2x16xf32>
    %cst_15 = arith.constant dense<0.000000e+00> : vector<2xf32>
    %82 = vector.multi_reduction <add>, %81, %cst_15 [1] : vector<2x16xf32> to vector<2xf32>
    %83 = vector.extract_strided_slice %50 {offsets = [0, 4, 4], sizes = [2, 1, 16], strides = [1, 1, 1]} : vector<2x8x24xf32> to vector<2x1x16xf32>
    %84 = vector.shape_cast %83 : vector<2x1x16xf32> to vector<2x16xf32>
    %85 = vector.extract_strided_slice %3 {offsets = [0, 64], sizes = [2, 16], strides = [1, 1]} : vector<2x128xf32> to vector<2x16xf32>
    %86 = arith.subf %85, %84 : vector<2x16xf32>
    %87 = arith.mulf %84, %84 : vector<2x16xf32>
    %cst_16 = arith.constant dense<0.000000e+00> : vector<2xf32>
    %88 = vector.multi_reduction <add>, %87, %cst_16 [1] : vector<2x16xf32> to vector<2xf32>
    %89 = arith.mulf %86, %86 : vector<2x16xf32>
    %cst_17 = arith.constant dense<0.000000e+00> : vector<2xf32>
    %90 = vector.multi_reduction <add>, %89, %cst_17 [1] : vector<2x16xf32> to vector<2xf32>
    %91 = vector.extract_strided_slice %50 {offsets = [0, 5, 5], sizes = [2, 1, 16], strides = [1, 1, 1]} : vector<2x8x24xf32> to vector<2x1x16xf32>
    %92 = vector.shape_cast %91 : vector<2x1x16xf32> to vector<2x16xf32>
    %93 = vector.extract_strided_slice %3 {offsets = [0, 80], sizes = [2, 16], strides = [1, 1]} : vector<2x128xf32> to vector<2x16xf32>
    %94 = arith.subf %93, %92 : vector<2x16xf32>
    %95 = arith.mulf %92, %92 : vector<2x16xf32>
    %cst_18 = arith.constant dense<0.000000e+00> : vector<2xf32>
    %96 = vector.multi_reduction <add>, %95, %cst_18 [1] : vector<2x16xf32> to vector<2xf32>
    %97 = arith.mulf %94, %94 : vector<2x16xf32>
    %cst_19 = arith.constant dense<0.000000e+00> : vector<2xf32>
    %98 = vector.multi_reduction <add>, %97, %cst_19 [1] : vector<2x16xf32> to vector<2xf32>
    %99 = vector.extract_strided_slice %50 {offsets = [0, 6, 6], sizes = [2, 1, 16], strides = [1, 1, 1]} : vector<2x8x24xf32> to vector<2x1x16xf32>
    %100 = vector.shape_cast %99 : vector<2x1x16xf32> to vector<2x16xf32>
    %101 = vector.extract_strided_slice %3 {offsets = [0, 96], sizes = [2, 16], strides = [1, 1]} : vector<2x128xf32> to vector<2x16xf32>
    %102 = arith.subf %101, %100 : vector<2x16xf32>
    %103 = arith.mulf %100, %100 : vector<2x16xf32>
    %cst_20 = arith.constant dense<0.000000e+00> : vector<2xf32>
    %104 = vector.multi_reduction <add>, %103, %cst_20 [1] : vector<2x16xf32> to vector<2xf32>
    %105 = arith.mulf %102, %102 : vector<2x16xf32>
    %cst_21 = arith.constant dense<0.000000e+00> : vector<2xf32>
    %106 = vector.multi_reduction <add>, %105, %cst_21 [1] : vector<2x16xf32> to vector<2xf32>
    %107 = vector.extract_strided_slice %50 {offsets = [0, 7, 7], sizes = [2, 1, 16], strides = [1, 1, 1]} : vector<2x8x24xf32> to vector<2x1x16xf32>
    %108 = vector.shape_cast %107 : vector<2x1x16xf32> to vector<2x16xf32>
    %109 = vector.extract_strided_slice %3 {offsets = [0, 112], sizes = [2, 16], strides = [1, 1]} : vector<2x128xf32> to vector<2x16xf32>
    %110 = arith.subf %109, %108 : vector<2x16xf32>
    %111 = arith.mulf %108, %108 : vector<2x16xf32>
    %cst_22 = arith.constant dense<0.000000e+00> : vector<2xf32>
    %112 = vector.multi_reduction <add>, %111, %cst_22 [1] : vector<2x16xf32> to vector<2xf32>
    %113 = arith.mulf %110, %110 : vector<2x16xf32>
    %cst_23 = arith.constant dense<0.000000e+00> : vector<2xf32>
    %114 = vector.multi_reduction <add>, %113, %cst_23 [1] : vector<2x16xf32> to vector<2xf32>
    %115 = vector.shape_cast %56 : vector<2xf32> to vector<1x2xf32>
    %116 = vector.shape_cast %64 : vector<2xf32> to vector<1x2xf32>
    %117 = vector.shape_cast %72 : vector<2xf32> to vector<1x2xf32>
    %118 = vector.shape_cast %80 : vector<2xf32> to vector<1x2xf32>
    %119 = vector.shape_cast %88 : vector<2xf32> to vector<1x2xf32>
    %120 = vector.shape_cast %96 : vector<2xf32> to vector<1x2xf32>
    %121 = vector.shape_cast %104 : vector<2xf32> to vector<1x2xf32>
    %122 = vector.shape_cast %112 : vector<2xf32> to vector<1x2xf32>
    %123 = tpu.concatenate %115, %116, %117, %118, %119, %120, %121, %122 in 0 : vector<1x2xf32>, vector<1x2xf32>, vector<1x2xf32>, vector<1x2xf32>, vector<1x2xf32>, vector<1x2xf32>, vector<1x2xf32>, vector<1x2xf32> -> vector<8x2xf32>
    %124 = vector.shape_cast %58 : vector<2xf32> to vector<1x2xf32>
    %125 = vector.shape_cast %66 : vector<2xf32> to vector<1x2xf32>
    %126 = vector.shape_cast %74 : vector<2xf32> to vector<1x2xf32>
    %127 = vector.shape_cast %82 : vector<2xf32> to vector<1x2xf32>
    %128 = vector.shape_cast %90 : vector<2xf32> to vector<1x2xf32>
    %129 = vector.shape_cast %98 : vector<2xf32> to vector<1x2xf32>
    %130 = vector.shape_cast %106 : vector<2xf32> to vector<1x2xf32>
    %131 = vector.shape_cast %114 : vector<2xf32> to vector<1x2xf32>
    %132 = tpu.concatenate %124, %125, %126, %127, %128, %129, %130, %131 in 0 : vector<1x2xf32>, vector<1x2xf32>, vector<1x2xf32>, vector<1x2xf32>, vector<1x2xf32>, vector<1x2xf32>, vector<1x2xf32>, vector<1x2xf32> -> vector<8x2xf32>
    %133 = math.log %123 : vector<8x2xf32>
    %134 = math.log %132 : vector<8x2xf32>
    %135 = arith.subf %133, %134 : vector<8x2xf32>
    %cst_24 = arith.constant 4.34294462 : f32
    %136 = vector.broadcast %cst_24 : f32 to vector<8x2xf32>
    %137 = arith.mulf %136, %135 : vector<8x2xf32>
    %c0_25 = arith.constant 0 : index
    %c0_26 = arith.constant 0 : index
    %138 = vector.load %arg4[%c0_25, %c0_26] : memref<8x2xf32, #tpu.memory_space<vmem>>, vector<8x2xf32>
    tpu.vector_store %arg4[%c0_25, %c0_26], %137 {strides = array<i32>} : memref<8x2xf32, #tpu.memory_space<vmem>>, vector<8x2xf32>,
    return
  }
  func.func @transform_0(%arg0: i32) -> (i32, i32, i32) {
    %c0_i32 = arith.constant 0 : i32
    %c0_i32_0 = arith.constant 0 : i32
    %c0_i32_1 = arith.constant 0 : i32
    return %arg0, %c0_i32, %c0_i32_0 : i32, i32, i32
  }
  func.func @transform_1(%arg0: i32) -> (i32, i32, i32) {
    %c0_i32 = arith.constant 0 : i32
    %c0_i32_0 = arith.constant 0 : i32
    %c0_i32_1 = arith.constant 0 : i32
    return %arg0, %c0_i32, %c0_i32_0 : i32, i32, i32
  }
  func.func @transform_2(%arg0: i32) -> (i32, i32, i32) {
    %c0_i32 = arith.constant 0 : i32
    %c0_i32_0 = arith.constant 0 : i32
    %c0_i32_1 = arith.constant 0 : i32
    return %arg0, %c0_i32, %c0_i32_0 : i32, i32, i32
  }
  func.func @transform_3(%arg0: i32) -> (i32, i32) {
    %c0_i32 = arith.constant 0 : i32
    %c0_i32_0 = arith.constant 0 : i32
    return %c0_i32, %arg0 : i32, i32
  }
}

</mosaic_0001>

<llo_original>
// kernel: tpu_custom_call.1
$region0: #{tpu_custom_call.1}
  #allocation0 [shape = 'u32[]', space=smem, size = 0x4, offset = 0x4, fixed_abs, tag = 'smem constant byte address 0x4 - core index']
  #allocation1 [shape = 'u32[144,128]{1,0:T(1,128)}', space=vmem, size = 0x12000, scoped, tag = 'internal scratch']
  %s0 = inlined_call_operand.hbm [shape: f32[2,8,8], index: 0, kind: input, shape index: {}]
  %s1 = inlined_call_operand.vmem [shape: f32[2,8,24], index: 1, kind: input, shape index: {}]
  %s2 = inlined_call_operand.vmem [shape: f32[2,3,128], index: 2, kind: input, shape index: {}]
  %s3 = inlined_call_operand.vmem [shape: f32[8,2], index: 3, kind: output, shape index: {}]
  %s4 = sld [smem:[#allocation0]]
  $region26: #{tpu_custom_call.1} parent=0
    _
  %s6 = ssub.s32 1, %s4
  %s7 = scalar_select 0, %s6, %s4
  $region1: #{tpu_custom_call.1} parent=0
    #allocation2 [shape = 'u8[8192]{0}', space=vmem, size = 0x2000, scoped, tag = 'input window, operand 0, single buffered']
    #allocation3 [shape = 's32[1]{0}', space=sflag, size = 0x4, scoped, tag = 'scoped memory for tpu_custom_call.1']
    %8 = vsyncpa [#allocation3], 0
    // Predicated region
    $region2: #{tpu_custom_call.1} parent=1 // pred_check
      _
    $region3: #{tpu_custom_call.1} parent=1 // pred_check_branch
      %10 = sbr.rel (0) target = $region5
    $region4: #{tpu_custom_call.1} parent=1 // pred_region
      %s12 = ssub.s32 256, 256
      %13 = vsyncadd [#allocation3], %s12
      %s14 = sshll.u32 [#allocation2], 4
      %s15 = int_to_ptr.vmem [resolvable:$true] %s14
      %20 = dma.hbm_to_vmem [thread:$0]  %s0, 256, %s15, [#allocation3], 128, 128, 8
    $region5: #{tpu_custom_call.1} parent=1 // pred_fallthru
      _
    // Predicated region
    $region6: #{tpu_custom_call.1} parent=1 // pred_check
      _
    $region7: #{tpu_custom_call.1} parent=1 // pred_check_branch
      %22 = sbr.rel (0) target = $region9
    $region8: #{tpu_custom_call.1} parent=1 // pred_region
      _
    $region9: #{tpu_custom_call.1} parent=1 // pred_fallthru
      _
    // Predicated region
    $region10: #{tpu_custom_call.1} parent=1 // pred_check
      _
    $region11: #{tpu_custom_call.1} parent=1 // pred_check_branch
      %24 = sbr.rel (0) target = $region13
    $region12: #{tpu_custom_call.1} parent=1 // pred_region
      _
    $region13: #{tpu_custom_call.1} parent=1 // pred_fallthru
      _
    // Predicated region
    $region14: #{tpu_custom_call.1} parent=1 // pred_check
      _
    $region15: #{tpu_custom_call.1} parent=1 // pred_check_branch
      %26 = sbr.rel (0) target = $region17
    $region16: #{tpu_custom_call.1} parent=1 // pred_region
      %27 = dma.done [#allocation3], 256
    $region17: #{tpu_custom_call.1} parent=1 // pred_fallthru
      _
    %v28 = vld [vmem:[#allocation2] sm:$0xff]
    %v29 = vld [vmem:[#allocation2 + $0x8] sm:$0xff]
    %v30 = vld [vmem:[%s1] sm:$0xff]
    %v31 = vld [vmem:[%s1 + $0x8] sm:$0xff]
    %v32 = vld [vmem:[%s2] sm:$0x7]
    %v33 = vld [vmem:[%s2 + $0x4] sm:$0x7]
    %vm34 = vcmask 1042432
    %v35 = vsel %vm34, %v32, 0.0
    %v36 = vrot.slane %v35, 4
    %v37 = vadd.f32 %v35, %v36
    %v38 = vrot.slane %v37, 2
    %v39 = vadd.f32 %v37, %v38
    %v40 = vrot.slane %v39, 1
    %v41 = vadd.f32 %v39, %v40
    %v42 = vsel %vm34, %v33, 0.0
    %v43 = vrot.slane %v42, 4
    %v44 = vadd.f32 %v42, %v43
    %v45 = vrot.slane %v44, 2
    %v46 = vadd.f32 %v44, %v45
    %v47 = vrot.slane %v46, 1
    %v48 = vadd.f32 %v46, %v47
    %50 = vset.pattern.permute.xlu0 0
    %51 = vperm.xlu0 %50, %v28
    %v52 = vpop.permute.xlu0 %51
    %55 = vset.pattern.permute.xlu0 0
    %56 = vperm.xlu0 %55, %v29
    %v57 = vpop.permute.xlu0 %56
    %v59 = vlaneseq
    %v60 = vshrl.u32 %v59, 7
    %v61 = vsub.s32 0, %v60
    %v62 = vrot.slane %v30, %v61
    %v63 = vlaneseq
    %v64 = vshrl.u32 %v63, 7
    %v65 = vsub.s32 0, %v64
    %v66 = vrot.slane %v31, %v65
    %v67 = vmul.f32 %v52, %v62
    %v68 = vmul.f32 %v57, %v66
    %69 = vset.pattern.permute.xlu0 1
    %70 = vperm.xlu0 %69, %v28
    %v71 = vpop.permute.xlu0 %70
    %73 = vset.pattern.permute.xlu0 1
    %74 = vperm.xlu0 %73, %v29
    %v75 = vpop.permute.xlu0 %74
    %v77 = vlaneseq
    %v78 = vshrl.u32 %v77, 7
    %v79 = vsub.s32 1, %v78
    %v80 = vrot.slane %v30, %v79
    %v81 = vlaneseq
    %v82 = vshrl.u32 %v81, 7
    %v83 = vsub.s32 1, %v82
    %v84 = vrot.slane %v31, %v83
    %v85 = vmul.f32 %v71, %v80
    %v86 = vmul.f32 %v75, %v84
    %v87 = vadd.f32 %v67, %v85
    %v88 = vadd.f32 %v68, %v86
    %89 = vset.pattern.permute.xlu0 2
    %90 = vperm.xlu0 %89, %v28
    %v91 = vpop.permute.xlu0 %90
    %93 = vset.pattern.permute.xlu0 2
    %94 = vperm.xlu0 %93, %v29
    %v95 = vpop.permute.xlu0 %94
    %v97 = vlaneseq
    %v98 = vshrl.u32 %v97, 7
    %v99 = vsub.s32 2, %v98
    %v100 = vrot.slane %v30, %v99
    %v101 = vlaneseq
    %v102 = vshrl.u32 %v101, 7
    %v103 = vsub.s32 2, %v102
    %v104 = vrot.slane %v31, %v103
    %v105 = vmul.f32 %v91, %v100
    %v106 = vmul.f32 %v95, %v104
    %v107 = vadd.f32 %v87, %v105
    %v108 = vadd.f32 %v88, %v106
    %109 = vset.pattern.permute.xlu0 3
    %110 = vperm.xlu0 %109, %v28
    %v111 = vpop.permute.xlu0 %110
    %113 = vset.pattern.permute.xlu0 3
    %114 = vperm.xlu0 %113, %v29
    %v115 = vpop.permute.xlu0 %114
    %v117 = vlaneseq
    %v118 = vshrl.u32 %v117, 7
    %v119 = vsub.s32 3, %v118
    %v120 = vrot.slane %v30, %v119
    %v121 = vlaneseq
    %v122 = vshrl.u32 %v121, 7
    %v123 = vsub.s32 3, %v122
    %v124 = vrot.slane %v31, %v123
    %v125 = vmul.f32 %v111, %v120
    %v126 = vmul.f32 %v115, %v124
    %v127 = vadd.f32 %v107, %v125
    %v128 = vadd.f32 %v108, %v126
    %129 = vset.pattern.permute.xlu0 4
    %130 = vperm.xlu0 %129, %v28
    %v131 = vpop.permute.xlu0 %130
    %133 = vset.pattern.permute.xlu0 4
    %134 = vperm.xlu0 %133, %v29
    %v135 = vpop.permute.xlu0 %134
    %v137 = vlaneseq
    %v138 = vshrl.u32 %v137, 7
    %v139 = vsub.s32 4, %v138
    %v140 = vrot.slane %v30, %v139
    %v141 = vlaneseq
    %v142 = vshrl.u32 %v141, 7
    %v143 = vsub.s32 4, %v142
    %v144 = vrot.slane %v31, %v143
    %v145 = vmul.f32 %v131, %v140
    %v146 = vmul.f32 %v135, %v144
    %v147 = vadd.f32 %v127, %v145
    %v148 = vadd.f32 %v128, %v146
    %149 = vset.pattern.permute.xlu0 5
    %150 = vperm.xlu0 %149, %v28
    %v151 = vpop.permute.xlu0 %150
    %153 = vset.pattern.permute.xlu0 5
    %154 = vperm.xlu0 %153, %v29
    %v155 = vpop.permute.xlu0 %154
    %v157 = vlaneseq
    %v158 = vshrl.u32 %v157, 7
    %v159 = vsub.s32 5, %v158
    %v160 = vrot.slane %v30, %v159
    %v161 = vlaneseq
    %v162 = vshrl.u32 %v161, 7
    %v163 = vsub.s32 5, %v162
    %v164 = vrot.slane %v31, %v163
    %v165 = vmul.f32 %v151, %v160
    %v166 = vmul.f32 %v155, %v164
    %v167 = vadd.f32 %v147, %v165
    %v168 = vadd.f32 %v148, %v166
    %169 = vset.pattern.permute.xlu0 6
    %170 = vperm.xlu0 %169, %v28
    %v171 = vpop.permute.xlu0 %170
    %173 = vset.pattern.permute.xlu0 6
    %174 = vperm.xlu0 %173, %v29
    %v175 = vpop.permute.xlu0 %174
    %v177 = vlaneseq
    %v178 = vshrl.u32 %v177, 7
    %v179 = vsub.s32 6, %v178
    %v180 = vrot.slane %v30, %v179
    %v181 = vlaneseq
    %v182 = vshrl.u32 %v181, 7
    %v183 = vsub.s32 6, %v182
    %v184 = vrot.slane %v31, %v183
    %v185 = vmul.f32 %v171, %v180
    %v186 = vmul.f32 %v175, %v184
    %v187 = vadd.f32 %v167, %v185
    %v188 = vadd.f32 %v168, %v186
    %189 = vset.pattern.permute.xlu0 7
    %190 = vperm.xlu0 %189, %v28
    %v191 = vpop.permute.xlu0 %190
    %193 = vset.pattern.permute.xlu0 7
    %194 = vperm.xlu0 %193, %v29
    %v195 = vpop.permute.xlu0 %194
    %v197 = vlaneseq
    %v198 = vshrl.u32 %v197, 7
    %v199 = vsub.s32 7, %v198
    %v200 = vrot.slane %v30, %v199
    %v201 = vlaneseq
    %v202 = vshrl.u32 %v201, 7
    %v203 = vsub.s32 7, %v202
    %v204 = vrot.slane %v31, %v203
    %v205 = vmul.f32 %v191, %v200
    %v206 = vmul.f32 %v195, %v204
    %v207 = vadd.f32 %v187, %v205
    %v208 = vadd.f32 %v188, %v206
    %v209 = vsub.f32 %v41, %v207
    %v210 = vsub.f32 %v48, %v208
    %v211 = vmul.f32 %v207, %v207
    %v212 = vmul.f32 %v208, %v208
    %v215 = vrot.slane %v212, 7
    %vm216 = vcmask 1041409
    %v217 = vsel %vm216, %v215, %v211
    %vm219 = vcmask 123904
    %v220 = vsel %vm219, %v217, 0.0
    %221 = vadd.xlane.f32.xlu0 %v220
    %v222 = vpop.xlane.xlu0 %221
    %v223 = vmul.f32 %v209, %v209
    %v224 = vmul.f32 %v210, %v210
    %v227 = vrot.slane %v224, 7
    %v228 = vsel %vm216, %v227, %v223
    %v230 = vsel %vm219, %v228, 0.0
    %231 = vadd.xlane.f32.xlu0 %v230
    %v232 = vpop.xlane.xlu0 %231
    %v235 = vrot.slane %v207, 1
    %v236 = vrot.slane %v208, 1
    %237 = vrot.lane.b32.xlu0 %v235, 15
    %v238 = vpop.permute.xlu0 %237
    %239 = vrot.lane.b32.xlu0 %v236, 15
    %v240 = vpop.permute.xlu0 %239
    %v243 = vsub.f32 %v41, %v238
    %v244 = vsub.f32 %v48, %v240
    %vm245 = vcmask 1042434
    %v246 = vsel %vm245, %v215, %v211
    %247 = vrot.lane.b32.xlu0 %v246, 127
    %v248 = vpop.permute.xlu0 %247
    %vm250 = vcmask 124929
    %v251 = vsel %vm250, %v248, 0.0
    %252 = vadd.xlane.f32.xlu0 %v251
    %v253 = vpop.xlane.xlu0 %252
    %v254 = vmul.f32 %v243, %v243
    %v255 = vmul.f32 %v244, %v244
    %v258 = vrot.slane %v255, 7
    %v259 = vsel %vm216, %v258, %v254
    %260 = vrot.lane.b32.xlu0 %v259, 112
    %v261 = vpop.permute.xlu0 %260
    %v263 = vsel %vm219, %v261, 0.0
    %264 = vadd.xlane.f32.xlu0 %v263
    %v265 = vpop.xlane.xlu0 %264
    %v266 = vrot.slane %v207, 2
    %v267 = vrot.slane %v208, 2
    %268 = vrot.lane.b32.xlu0 %v266, 30
    %v269 = vpop.permute.xlu0 %268
    %270 = vrot.lane.b32.xlu0 %v267, 30
    %v271 = vpop.permute.xlu0 %270
    %v274 = vsub.f32 %v41, %v269
    %v275 = vsub.f32 %v48, %v271
    %vm276 = vcmask 1043459
    %v277 = vsel %vm276, %v215, %v211
    %278 = vrot.lane.b32.xlu0 %v277, 126
    %v279 = vpop.permute.xlu0 %278
    %vm281 = vcmask 125954
    %v282 = vsel %vm281, %v279, 0.0
    %283 = vadd.xlane.f32.xlu0 %v282
    %v284 = vpop.xlane.xlu0 %283
    %v285 = vmul.f32 %v274, %v274
    %v286 = vmul.f32 %v275, %v275
    %v289 = vrot.slane %v286, 7
    %v290 = vsel %vm216, %v289, %v285
    %291 = vrot.lane.b32.xlu0 %v290, 96
    %v292 = vpop.permute.xlu0 %291
    %v294 = vsel %vm219, %v292, 0.0
    %295 = vadd.xlane.f32.xlu0 %v294
    %v296 = vpop.xlane.xlu0 %295
    %v297 = vrot.slane %v207, 3
    %v298 = vrot.slane %v208, 3
    %299 = vrot.lane.b32.xlu0 %v297, 45
    %v300 = vpop.permute.xlu0 %299
    %301 = vrot.lane.b32.xlu0 %v298, 45
    %v302 = vpop.permute.xlu0 %301
    %v305 = vsub.f32 %v41, %v300
    %v306 = vsub.f32 %v48, %v302
    %vm307 = vcmask 1044484
    %v308 = vsel %vm307, %v215, %v211
    %309 = vrot.lane.b32.xlu0 %v308, 125
    %v310 = vpop.permute.xlu0 %309
    %vm312 = vcmask 126979
    %v313 = vsel %vm312, %v310, 0.0
    %314 = vadd.xlane.f32.xlu0 %v313
    %v315 = vpop.xlane.xlu0 %314
    %v316 = vmul.f32 %v305, %v305
    %v317 = vmul.f32 %v306, %v306
    %v320 = vrot.slane %v317, 7
    %v321 = vsel %vm216, %v320, %v316
    %322 = vrot.lane.b32.xlu0 %v321, 80
    %v323 = vpop.permute.xlu0 %322
    %v325 = vsel %vm219, %v323, 0.0
    %326 = vadd.xlane.f32.xlu0 %v325
    %v327 = vpop.xlane.xlu0 %326
    %v328 = vrot.slane %v207, 4
    %v329 = vrot.slane %v208, 4
    %330 = vrot.lane.b32.xlu0 %v328, 60
    %v331 = vpop.permute.xlu0 %330
    %332 = vrot.lane.b32.xlu0 %v329, 60
    %v333 = vpop.permute.xlu0 %332
    %v336 = vsub.f32 %v41, %v331
    %v337 = vsub.f32 %v48, %v333
    %vm338 = vcmask 1045509
    %v339 = vsel %vm338, %v215, %v211
    %340 = vrot.lane.b32.xlu0 %v339, 124
    %v341 = vpop.permute.xlu0 %340
    %vm343 = vcmask 128004
    %v344 = vsel %vm343, %v341, 0.0
    %345 = vadd.xlane.f32.xlu0 %v344
    %v346 = vpop.xlane.xlu0 %345
    %v347 = vmul.f32 %v336, %v336
    %v348 = vmul.f32 %v337, %v337
    %v351 = vrot.slane %v348, 7
    %v352 = vsel %vm216, %v351, %v347
    %353 = vrot.lane.b32.xlu0 %v352, 64
    %v354 = vpop.permute.xlu0 %353
    %v356 = vsel %vm219, %v354, 0.0
    %357 = vadd.xlane.f32.xlu0 %v356
    %v358 = vpop.xlane.xlu0 %357
    %v359 = vrot.slane %v207, 5
    %v360 = vrot.slane %v208, 5
    %361 = vrot.lane.b32.xlu0 %v359, 75
    %v362 = vpop.permute.xlu0 %361
    %363 = vrot.lane.b32.xlu0 %v360, 75
    %v364 = vpop.permute.xlu0 %363
    %v367 = vsub.f32 %v41, %v362
    %v368 = vsub.f32 %v48, %v364
    %vm369 = vcmask 1046534
    %v370 = vsel %vm369, %v215, %v211
    %371 = vrot.lane.b32.xlu0 %v370, 123
    %v372 = vpop.permute.xlu0 %371
    %vm374 = vcmask 129029
    %v375 = vsel %vm374, %v372, 0.0
    %376 = vadd.xlane.f32.xlu0 %v375
    %v377 = vpop.xlane.xlu0 %376
    %v378 = vmul.f32 %v367, %v367
    %v379 = vmul.f32 %v368, %v368
    %v382 = vrot.slane %v379, 7
    %v383 = vsel %vm216, %v382, %v378
    %384 = vrot.lane.b32.xlu0 %v383, 48
    %v385 = vpop.permute.xlu0 %384
    %v387 = vsel %vm219, %v385, 0.0
    %388 = vadd.xlane.f32.xlu0 %v387
    %v389 = vpop.xlane.xlu0 %388
    %v390 = vrot.slane %v207, 6
    %v391 = vrot.slane %v208, 6
    %392 = vrot.lane.b32.xlu0 %v390, 90
    %v393 = vpop.permute.xlu0 %392
    %394 = vrot.lane.b32.xlu0 %v391, 90
    %v395 = vpop.permute.xlu0 %394
    %v398 = vsub.f32 %v41, %v393
    %v399 = vsub.f32 %v48, %v395
    %vm400 = vcmask 1047559
    %v401 = vsel %vm400, %v215, %v211
    %402 = vrot.lane.b32.xlu0 %v401, 122
    %v403 = vpop.permute.xlu0 %402
    %vm405 = vcmask 130054
    %v406 = vsel %vm405, %v403, 0.0
    %407 = vadd.xlane.f32.xlu0 %v406
    %v408 = vpop.xlane.xlu0 %407
    %v409 = vmul.f32 %v398, %v398
    %v410 = vmul.f32 %v399, %v399
    %v413 = vrot.slane %v410, 7
    %v414 = vsel %vm216, %v413, %v409
    %415 = vrot.lane.b32.xlu0 %v414, 32
    %v416 = vpop.permute.xlu0 %415
    %v418 = vsel %vm219, %v416, 0.0
    %419 = vadd.xlane.f32.xlu0 %v418
    %v420 = vpop.xlane.xlu0 %419
    %v421 = vrot.slane %v207, 7
    %v422 = vrot.slane %v208, 7
    %423 = vrot.lane.b32.xlu0 %v421, 105
    %v424 = vpop.permute.xlu0 %423
    %425 = vrot.lane.b32.xlu0 %v422, 105
    %v426 = vpop.permute.xlu0 %425
    %v429 = vsub.f32 %v41, %v424
    %v430 = vsub.f32 %v48, %v426
    %431 = vrot.lane.b32.xlu0 %v211, 121
    %v432 = vpop.permute.xlu0 %431
    %433 = vrot.lane.b32.xlu0 %v215, 121
    %v434 = vpop.permute.xlu0 %433
    %vm437 = vcmask 130055
    %v438 = vsel %vm437, %v432, 0.0
    %439 = vadd.xlane.f32.xlu0 %v438
    %v440 = vpop.xlane.xlu0 %439
    %vm441 = vcmask 122880
    %v442 = vsel %vm441, %v434, 0.0
    %443 = vadd.xlane.f32.xlu0 %v442
    %v444 = vpop.xlane.xlu0 %443
    %v445 = vmul.f32 %v429, %v429
    %v446 = vmul.f32 %v430, %v430
    %v449 = vrot.slane %v446, 7
    %v450 = vsel %vm216, %v449, %v445
    %451 = vrot.lane.b32.xlu0 %v450, 16
    %v452 = vpop.permute.xlu0 %451
    %v454 = vsel %vm219, %v452, 0.0
    %455 = vadd.xlane.f32.xlu0 %v454
    %v456 = vpop.xlane.xlu0 %455
    %v458 = vlaneseq
    %v459 = vand.u32 %v458, 127
    %v460 = vlaneseq
    %v461 = vshrl.u32 %v460, 7
    %v462 = vsub.s32 %v459, %v461
    %v463 = vrot.slane %v222, %v462
    %v466 = vadd.s32 %v459, 1
    %v467 = vlaneseq
    %v468 = vshrl.u32 %v467, 7
    %v469 = vsub.s32 %v466, %v468
    %v470 = vrot.slane %v253, %v469
    %v473 = vadd.s32 %v459, 2
    %v474 = vlaneseq
    %v475 = vshrl.u32 %v474, 7
    %v476 = vsub.s32 %v473, %v475
    %v477 = vrot.slane %v284, %v476
    %v480 = vadd.s32 %v459, 3
    %v481 = vlaneseq
    %v482 = vshrl.u32 %v481, 7
    %v483 = vsub.s32 %v480, %v482
    %v484 = vrot.slane %v315, %v483
    %v487 = vadd.s32 %v459, 4
    %v488 = vlaneseq
    %v489 = vshrl.u32 %v488, 7
    %v490 = vsub.s32 %v487, %v489
    %v491 = vrot.slane %v346, %v490
    %v494 = vadd.s32 %v459, 5
    %v495 = vlaneseq
    %v496 = vshrl.u32 %v495, 7
    %v497 = vsub.s32 %v494, %v496
    %v498 = vrot.slane %v377, %v497
    %v501 = vadd.s32 %v459, 6
    %v502 = vlaneseq
    %v503 = vshrl.u32 %v502, 7
    %v504 = vsub.s32 %v501, %v503
    %v505 = vrot.slane %v408, %v504
    %v509 = vadd.s32 %v459, 7
    %v510 = vlaneseq
    %v511 = vshrl.u32 %v510, 7
    %v512 = vsub.s32 %v509, %v511
    %v513 = vrot.slane %v440, %v512
    %v514 = vadd.s32 %v459, 4294967295
    %v515 = vlaneseq
    %v516 = vshrl.u32 %v515, 7
    %v517 = vsub.s32 %v514, %v516
    %v518 = vrot.slane %v444, %v517
    %vm519 = vcmask 72712
    %v520 = vsel %vm519, %v518, %v513
    %vm522 = vcmask 1040384
    %v523 = vsel %vm522, %v463, %v470
    %vm524 = vcmask 1041408
    %v525 = vsel %vm524, %v523, %v477
    %v526 = vsel %vm34, %v525, %v484
    %vm527 = vcmask 1043456
    %v528 = vsel %vm527, %v526, %v491
    %vm529 = vcmask 1044480
    %v530 = vsel %vm529, %v528, %v498
    %vm531 = vcmask 1045504
    %v532 = vsel %vm531, %v530, %v505
    %vm533 = vcmask 1046528
    %v534 = vsel %vm533, %v532, %v520
    %v536 = vlaneseq
    %v537 = vshrl.u32 %v536, 7
    %v538 = vsub.s32 %v459, %v537
    %v539 = vrot.slane %v232, %v538
    %v542 = vlaneseq
    %v543 = vshrl.u32 %v542, 7
    %v544 = vsub.s32 %v459, %v543
    %v545 = vrot.slane %v265, %v544
    %v548 = vlaneseq
    %v549 = vshrl.u32 %v548, 7
    %v550 = vsub.s32 %v459, %v549
    %v551 = vrot.slane %v296, %v550
    %v554 = vlaneseq
    %v555 = vshrl.u32 %v554, 7
    %v556 = vsub.s32 %v459, %v555
    %v557 = vrot.slane %v327, %v556
    %v560 = vlaneseq
    %v561 = vshrl.u32 %v560, 7
    %v562 = vsub.s32 %v459, %v561
    %v563 = vrot.slane %v358, %v562
    %v566 = vlaneseq
    %v567 = vshrl.u32 %v566, 7
    %v568 = vsub.s32 %v459, %v567
    %v569 = vrot.slane %v389, %v568
    %v572 = vlaneseq
    %v573 = vshrl.u32 %v572, 7
    %v574 = vsub.s32 %v459, %v573
    %v575 = vrot.slane %v420, %v574
    %v578 = vlaneseq
    %v579 = vshrl.u32 %v578, 7
    %v580 = vsub.s32 %v459, %v579
    %v581 = vrot.slane %v456, %v580
    %v583 = vsel %vm522, %v539, %v545
    %v584 = vsel %vm524, %v583, %v551
    %v585 = vsel %vm34, %v584, %v557
    %v586 = vsel %vm527, %v585, %v563
    %v587 = vsel %vm529, %v586, %v569
    %v588 = vsel %vm531, %v587, %v575
    %v589 = vsel %vm533, %v588, %v581
    %v590 = vlog2.pop %v534
    %v591 = vmul.f32 %v590, 0.6931472
    %v592 = vlog2.pop %v589
    %v593 = vmul.f32 %v592, 0.6931472
    %v594 = vsub.f32 %v591, %v593
    %v595 = vmul.f32 %v594, 4.3429446
    %vm596 = vcmask 15360
    %597 = vst.msk [vmem:[%s3] sm:$0xff] %vm596, %v595
    // Predicated region
    $region18: #{tpu_custom_call.1} parent=1 // pred_check
      _
    $region19: #{tpu_custom_call.1} parent=1 // pred_check_branch
      %599 = sbr.rel (0) target = $region21
    $region20: #{tpu_custom_call.1} parent=1 // pred_region
      _
    $region21: #{tpu_custom_call.1} parent=1 // pred_fallthru
      _
    // Predicated region
    $region22: #{tpu_custom_call.1} parent=1 // pred_check
      _
    $region23: #{tpu_custom_call.1} parent=1 // pred_check_branch
      %601 = sbr.rel (0) target = $region25
    $region24: #{tpu_custom_call.1} parent=1 // pred_region
      _
    $region25: #{tpu_custom_call.1} parent=1 // pred_fallthru
      _
    %602 = vsyncpa [#allocation3], 1

</llo_original>
